<compile_context>
chip_gen: v5e
topology: v5e:2x2
jax: 0.10.0
libtpu: 0.0.40
codegen_flags: <defaults>
</compile_context>

<pallas_src>
import functools

import numpy as np
import jax
import jax.numpy as jnp
from jax.experimental import pallas as pl
from jax.experimental.pallas import tpu as pltpu


def _edge_gcn_kernel(x_ref, l_ref, w_ref, o_ref, *,
                     edges_per_blk, num_batches, k1, compute_dtype):
    """One grid step handles `edges_per_blk` edge-feature slices.

    x_ref: (N, B*P*F)              columns ordered (b, m, f) -- all moments pre-powered.
    l_ref: (E_blk, N, N)           Laplacian slices for this block.
    w_ref: (E_blk, K1, B*P*F, B*S*P) block-diag (over batch & moment) projections.
    o_ref: (B, E_blk*N, S*P)       final-layout output block.
    """
    n_nodes = x_ref.shape[0]
    t_out = o_ref.shape[-1]                       # = S*P

    x0 = x_ref[...].astype(jnp.float32)           # (N, B*P*F)

    for el in range(edges_per_blk):               # static, unrolled
        l_e = l_ref[el].astype(compute_dtype)     # (N, N)

        # k = 0 term: identity chain -> one MXU matmul, all batches & moments.
        acc = jnp.dot(x0.astype(compute_dtype),
                      w_ref[el, 0].astype(compute_dtype),
                      preferred_element_type=jnp.float32)        # (N, B*S*P)

        # Laplacian chain: y_k = L^k @ [X^1 | ... | X^P]; fuse each y_k into acc
        # with a single block-diagonal projection matmul (no slab concats).
        y = x0
        for k in range(1, k1):
            y = jnp.dot(l_e, y.astype(compute_dtype),
                        preferred_element_type=jnp.float32)      # (N, B*P*F)
            acc = acc + jnp.dot(y.astype(compute_dtype),
                                w_ref[el, k].astype(compute_dtype),
                                preferred_element_type=jnp.float32)

        acc = jnp.maximum(acc, 0.0)                              # ReLU (f32 VPU)

        # Store in final layout: rows (b, e*N + n), last dim already s*P+m.
        for b in range(num_batches):
            o_ref[b, el * n_nodes:(el + 1) * n_nodes, :] = \
                acc[:, b * t_out:(b + 1) * t_out].astype(o_ref.dtype)


def _build_xpow_cat(X, num_moments):
    """X: (B, N, F) -> (N, B*P*F) with column index = b*(P*F) + m*F + f."""
    B, N, F = X.shape
    xp = jnp.stack([X ** (m + 1) for m in range(num_moments)], axis=2)  # (B,N,P,F)
    xp = jnp.transpose(xp, (1, 0, 2, 3))                                # (N,B,P,F)
    return xp.reshape(N, B * num_moments * F)


def _build_blockdiag_weights(W, num_batches):
    """W: (P, E, K1, F, S) -> (E, K1, B*P*F, B*S*P).

    Block-diagonal over (batch, moment) so that right-multiplying the chain
    output (N, B*P*F) yields the (N, B*S*P) projection for every batch & moment
    in ONE MXU pass per k, with the (s*P + m) interleaved output layout baked
    in.  Weight bytes scale as B^2 -- fine for small batch; switch to per-batch
    column slices inside the kernel if B grows large.
    """
    P, E, K1, F, S = W.shape
    B = num_batches
    eye_p = jnp.eye(P, dtype=W.dtype)                            # delta_{m q}
    eye_b = jnp.eye(B, dtype=W.dtype)                            # delta_{b c}
    Wt = jnp.transpose(W, (1, 2, 0, 3, 4))                       # (E, K1, P, F, S)
    Wbd = jnp.einsum('ekmfs,mq,bc->ekbmfcsq', Wt, eye_p, eye_b)  # (E,K1,B,P,F,B,S,P)
    return Wbd.reshape(E, K1, B * P * F, B * S * P)


def edge_laplacian_capsule_forward(X, L, W, *, compute_dtype=jnp.float32):
    """X: (B, N, F), L: (N, N, E), W: (P, E, K+1, F, S) -> (B, E*N, S*P).

    compute_dtype=jnp.bfloat16 casts only the MXU operands (f32 accumulation);
    f32 keeps bit-tight accuracy at demo sizes.
    """
    B, N, F = X.shape
    E = L.shape[2]
    P, _, K1, _, S = W.shape
    T = S * P

    # Hoisted out of the kernel: powers of X, Laplacian slices, fused weights.
    x_cat = _build_xpow_cat(X, P)                 # (N, B*P*F)
    l_t = jnp.transpose(L, (2, 0, 1))             # (E, N, N)
    w_bd = _build_blockdiag_weights(W, B)         # (E, K1, B*P*F, B*S*P)

    # One size-2 "parallel" grid axis (split E) so both v7x TensorCores get work;
    # on v5e/v6e this is just 2 sequential steps (everything fits in VMEM).
    n_blk = 2 if (E % 2 == 0 and E >= 2) else 1
    e_blk = E // n_blk

    kernel = functools.partial(
        _edge_gcn_kernel,
        edges_per_blk=e_blk, num_batches=B, k1=K1,
        compute_dtype=compute_dtype)

    return pl.pallas_call(
        kernel,
        out_shape=jax.ShapeDtypeStruct((B, E * N, T), X.dtype),
        grid_spec=pltpu.PrefetchScalarGridSpec(
            num_scalar_prefetch=0,
            grid=(n_blk,),
            in_specs=[
                pl.BlockSpec((N, B * P * F), lambda i: (0, 0)),
                pl.BlockSpec((e_blk, N, N), lambda i: (i, 0, 0)),
                pl.BlockSpec((e_blk, K1, B * P * F, B * T), lambda i: (i, 0, 0, 0)),
            ],
            out_specs=pl.BlockSpec((B, e_blk * N, T), lambda i: (0, i, 0)),
        ),
        compiler_params=pltpu.CompilerParams(
            dimension_semantics=("parallel",)),
    )(x_cat, l_t, w_bd)


def laplacian_gcn_forward(X, L, Wk, *, compute_dtype=jnp.float32):
    """Literal Laplacian_GCN.forward: X (B,N,F), L (N,N), Wk (K+1, F, out) -> (B,N,out)."""
    if L.ndim == 3 and L.shape[0] == 1:           # mirror of the torch squeeze(0) path
        L = jnp.squeeze(L, 0)
    return edge_laplacian_capsule_forward(
        X, L[..., None], Wk[None, None], compute_dtype=compute_dtype)


def reference_forward(X, L, W):
    """Pure-JAX reference mirroring the PyTorch modules."""
    B, N, F = X.shape
    E = L.shape[2]
    P, _, K1, _, S = W.shape
    outs = []
    for m in range(P):
        Xm = X ** (m + 1)
        per_edge = []
        for e in range(E):
            Le = L[:, :, e]
            y = Xm
            acc = jnp.zeros((B, N, S), jnp.float32)
            for k in range(K1):
                if k > 0:
                    y = jnp.einsum('nm,bmf->bnf', Le, y)
                acc = acc + jnp.einsum('bnf,fs->bns', y, W[m, e, k])
            per_edge.append(jax.nn.relu(acc))
        outs.append(jnp.concatenate(per_edge, axis=1))          # (B, E*N, S)
    out = jnp.stack(outs, -1).reshape(B, E * N, S * P)
    return jax.nn.relu(out)


if __name__ == "__main__":
    # ---- Secondary_Capsule-style composite (P moments x E edge features) ----
    B, N = 2, 16                 # batch, num graph nodes
    input_dim = 8                # node feature dim
    output_dim = 12              # capsule output dim
    edge_feat_dim = 4            # E ; output_dim % edge_feat_dim == 0
    p, k = 3, 3                  # moments, Laplacian polynomial order
    S = output_dim // edge_feat_dim
    K1 = k + 1

    key = jax.random.PRNGKey(0)
    kx, kl, kw = jax.random.split(key, 3)

    X = jax.random.normal(kx, (B, N, input_dim), dtype=jnp.float32)
    L = jax.random.normal(kl, (N, N, edge_feat_dim), dtype=jnp.float32) * 0.1

    # Deterministic xavier_uniform init for every nn.Linear(input_dim, S, bias=False);
    # weight (S, input_dim) stored transposed as (input_dim, S) for y @ W.
    bound = float(np.sqrt(6.0 / (input_dim + S)))
    W_oi = jax.random.uniform(kw, (p, edge_feat_dim, K1, S, input_dim),
                              dtype=jnp.float32, minval=-bound, maxval=bound)
    W = jnp.swapaxes(W_oi, -1, -2)            # (p, E, K+1, F, S)

    ref = reference_forward(X, L, W)

    out = jax.block_until_ready(edge_laplacian_capsule_forward(X, L, W))
    np.testing.assert_allclose(np.asarray(out), np.asarray(ref), rtol=1e-3, atol=1e-3)
    assert out.shape == (B, edge_feat_dim * N, S * p)

    # bf16 MXU-operand mode (v5e/v6e/v7x throughput), f32 accumulation -> loose tol.
    out_bf16 = jax.block_until_ready(
        edge_laplacian_capsule_forward(X, L, W, compute_dtype=jnp.bfloat16))
    np.testing.assert_allclose(np.asarray(out_bf16), np.asarray(ref),
                               rtol=5e-2, atol=5e-1)

    # ---- bare Laplacian_GCN (the literal spec module) ----
    gcn_out = 12
    kx2, kl2, kw2 = jax.random.split(jax.random.PRNGKey(1), 3)
    Xg = jax.random.normal(kx2, (B, N, input_dim), dtype=jnp.float32)
    Lg = jax.random.normal(kl2, (N, N), dtype=jnp.float32) * 0.1
    bg = float(np.sqrt(6.0 / (input_dim + gcn_out)))
    Wg_oi = jax.random.uniform(kw2, (K1, gcn_out, input_dim), dtype=jnp.float32,
                               minval=-bg, maxval=bg)
    Wg = jnp.swapaxes(Wg_oi, -1, -2)          # (K+1, F, out)

    gcn = jax.block_until_ready(laplacian_gcn_forward(Xg, Lg, Wg))
    gcn_ref = reference_forward(Xg, Lg[..., None], Wg[None, None])
    np.testing.assert_allclose(np.asarray(gcn), np.asarray(gcn_ref),
                               rtol=1e-3, atol=1e-3)
    assert gcn.shape == (B, N, gcn_out)

    print("KERNEL_OK")
</pallas_src>

<mosaic_0001>
module attributes {stable_mosaic.version = 11 : i64} {
  func.func @_edge_gcn_kernel(%arg0: i32, %arg1: memref<16x48xf32, #tpu.memory_space<vmem>>, %arg2: memref<2x16x16xf32, #tpu.memory_space<vmem>>, %arg3: memref<2x4x48x18xf32, #tpu.memory_space<vmem>>, %arg4: memref<2x32x9xf32, #tpu.memory_space<vmem>>) attributes {dimension_semantics = [#tpu.dimension_semantics<parallel>], iteration_bounds = array<i64: 2>, scalar_prefetch = 0 : i64, scratch_operands = 0 : i64, tpu.core_type = #tpu.core_type<tc>, window_params = [{pipeline_mode = #tpu.pipeline_mode<synchronous>, transform_indices = @transform_0, window_bounds = array<i64: 16, 48>}, {transform_indices = @transform_1, window_bounds = array<i64: 2, 16, 16>}, {transform_indices = @transform_2, window_bounds = array<i64: 2, 4, 48, 18>}, {transform_indices = @transform_3, window_bounds = array<i64: 2, 32, 9>}]} {
    %c0 = arith.constant 0 : index
    %c0_0 = arith.constant 0 : index
    %0 = vector.load %arg1[%c0, %c0_0] : memref<16x48xf32, #tpu.memory_space<vmem>>, vector<16x48xf32>
    %c0_1 = arith.constant 0 : index
    %c0_2 = arith.constant 0 : index
    %c0_3 = arith.constant 0 : index
    %1 = vector.load %arg2[%c0_1, %c0_2, %c0_3] : memref<2x16x16xf32, #tpu.memory_space<vmem>>, vector<1x16x16xf32>
    %2 = vector.shape_cast %1 : vector<1x16x16xf32> to vector<16x16xf32>
    %c0_4 = arith.constant 0 : index
    %c0_5 = arith.constant 0 : index
    %c0_6 = arith.constant 0 : index
    %c0_7 = arith.constant 0 : index
    %3 = vector.load %arg3[%c0_4, %c0_5, %c0_6, %c0_7] : memref<2x4x48x18xf32, #tpu.memory_space<vmem>>, vector<1x1x48x18xf32>
    %4 = vector.shape_cast %3 : vector<1x1x48x18xf32> to vector<48x18xf32>
    %cst = arith.constant dense<0.000000e+00> : vector<16x18xf32>
    %5 = tpu.matmul %0, %4, %cst {dimension_numbers = #tpu.dot_dimension_numbers<[1], [0], [0], [1], [0, 0, 1, 1], [], []>} : vector<16x48xf32>, vector<48x18xf32>, vector<16x18xf32> -> vector<16x18xf32>
    %cst_8 = arith.constant dense<0.000000e+00> : vector<16x48xf32>
    %6 = tpu.matmul %2, %0, %cst_8 {dimension_numbers = #tpu.dot_dimension_numbers<[1], [0], [0], [1], [0, 0, 1, 1], [], []>} : vector<16x16xf32>, vector<16x48xf32>, vector<16x48xf32> -> vector<16x48xf32>
    %c0_9 = arith.constant 0 : index
    %c1 = arith.constant 1 : index
    %c0_10 = arith.constant 0 : index
    %c0_11 = arith.constant 0 : index
    %7 = vector.load %arg3[%c0_9, %c1, %c0_10, %c0_11] : memref<2x4x48x18xf32, #tpu.memory_space<vmem>>, vector<1x1x48x18xf32>
    %8 = vector.shape_cast %7 : vector<1x1x48x18xf32> to vector<48x18xf32>
    %cst_12 = arith.constant dense<0.000000e+00> : vector<16x18xf32>
    %9 = tpu.matmul %6, %8, %cst_12 {dimension_numbers = #tpu.dot_dimension_numbers<[1], [0], [0], [1], [0, 0, 1, 1], [], []>} : vector<16x48xf32>, vector<48x18xf32>, vector<16x18xf32> -> vector<16x18xf32>
    %10 = arith.addf %5, %9 : vector<16x18xf32>
    %cst_13 = arith.constant dense<0.000000e+00> : vector<16x48xf32>
    %11 = tpu.matmul %2, %6, %cst_13 {dimension_numbers = #tpu.dot_dimension_numbers<[1], [0], [0], [1], [0, 0, 1, 1], [], []>} : vector<16x16xf32>, vector<16x48xf32>, vector<16x48xf32> -> vector<16x48xf32>
    %c0_14 = arith.constant 0 : index
    %c2 = arith.constant 2 : index
    %c0_15 = arith.constant 0 : index
    %c0_16 = arith.constant 0 : index
    %12 = vector.load %arg3[%c0_14, %c2, %c0_15, %c0_16] : memref<2x4x48x18xf32, #tpu.memory_space<vmem>>, vector<1x1x48x18xf32>
    %13 = vector.shape_cast %12 : vector<1x1x48x18xf32> to vector<48x18xf32>
    %cst_17 = arith.constant dense<0.000000e+00> : vector<16x18xf32>
    %14 = tpu.matmul %11, %13, %cst_17 {dimension_numbers = #tpu.dot_dimension_numbers<[1], [0], [0], [1], [0, 0, 1, 1], [], []>} : vector<16x48xf32>, vector<48x18xf32>, vector<16x18xf32> -> vector<16x18xf32>
    %15 = arith.addf %10, %14 : vector<16x18xf32>
    %cst_18 = arith.constant dense<0.000000e+00> : vector<16x48xf32>
    %16 = tpu.matmul %2, %11, %cst_18 {dimension_numbers = #tpu.dot_dimension_numbers<[1], [0], [0], [1], [0, 0, 1, 1], [], []>} : vector<16x16xf32>, vector<16x48xf32>, vector<16x48xf32> -> vector<16x48xf32>
    %c0_19 = arith.constant 0 : index
    %c3 = arith.constant 3 : index
    %c0_20 = arith.constant 0 : index
    %c0_21 = arith.constant 0 : index
    %17 = vector.load %arg3[%c0_19, %c3, %c0_20, %c0_21] : memref<2x4x48x18xf32, #tpu.memory_space<vmem>>, vector<1x1x48x18xf32>
    %18 = vector.shape_cast %17 : vector<1x1x48x18xf32> to vector<48x18xf32>
    %cst_22 = arith.constant dense<0.000000e+00> : vector<16x18xf32>
    %19 = tpu.matmul %16, %18, %cst_22 {dimension_numbers = #tpu.dot_dimension_numbers<[1], [0], [0], [1], [0, 0, 1, 1], [], []>} : vector<16x48xf32>, vector<48x18xf32>, vector<16x18xf32> -> vector<16x18xf32>
    %20 = arith.addf %15, %19 : vector<16x18xf32>
    %cst_23 = arith.constant 0.000000e+00 : f32
    %21 = vector.broadcast %cst_23 : f32 to vector<16x18xf32>
    %22 = arith.maximumf %20, %21 : vector<16x18xf32>
    %23 = vector.extract_strided_slice %22 {offsets = [0, 0], sizes = [16, 9], strides = [1, 1]} : vector<16x18xf32> to vector<16x9xf32>
    %c0_24 = arith.constant 0 : index
    %c0_25 = arith.constant 0 : index
    %c0_26 = arith.constant 0 : index
    %24 = vector.load %arg4[%c0_24, %c0_25, %c0_26] : memref<2x32x9xf32, #tpu.memory_space<vmem>>, vector<1x16x9xf32>
    %25 = vector.shape_cast %24 : vector<1x16x9xf32> to vector<16x9xf32>
    %26 = vector.shape_cast %23 : vector<16x9xf32> to vector<1x16x9xf32>
    tpu.vector_store %arg4[%c0_24, %c0_25, %c0_26], %26 {strides = array<i32>} : memref<2x32x9xf32, #tpu.memory_space<vmem>>, vector<1x16x9xf32>,
    %27 = vector.extract_strided_slice %22 {offsets = [0, 9], sizes = [16, 9], strides = [1, 1]} : vector<16x18xf32> to vector<16x9xf32>
    %c1_27 = arith.constant 1 : index
    %c0_28 = arith.constant 0 : index
    %c0_29 = arith.constant 0 : index
    %28 = vector.load %arg4[%c1_27, %c0_28, %c0_29] : memref<2x32x9xf32, #tpu.memory_space<vmem>>, vector<1x16x9xf32>
    %29 = vector.shape_cast %28 : vector<1x16x9xf32> to vector<16x9xf32>
    %30 = vector.shape_cast %27 : vector<16x9xf32> to vector<1x16x9xf32>
    tpu.vector_store %arg4[%c1_27, %c0_28, %c0_29], %30 {strides = array<i32>} : memref<2x32x9xf32, #tpu.memory_space<vmem>>, vector<1x16x9xf32>,
    %c1_30 = arith.constant 1 : index
    %c0_31 = arith.constant 0 : index
    %c0_32 = arith.constant 0 : index
    %31 = vector.load %arg2[%c1_30, %c0_31, %c0_32] : memref<2x16x16xf32, #tpu.memory_space<vmem>>, vector<1x16x16xf32>
    %32 = vector.shape_cast %31 : vector<1x16x16xf32> to vector<16x16xf32>
    %c1_33 = arith.constant 1 : index
    %c0_34 = arith.constant 0 : index
    %c0_35 = arith.constant 0 : index
    %c0_36 = arith.constant 0 : index
    %33 = vector.load %arg3[%c1_33, %c0_34, %c0_35, %c0_36] : memref<2x4x48x18xf32, #tpu.memory_space<vmem>>, vector<1x1x48x18xf32>
    %34 = vector.shape_cast %33 : vector<1x1x48x18xf32> to vector<48x18xf32>
    %cst_37 = arith.constant dense<0.000000e+00> : vector<16x18xf32>
    %35 = tpu.matmul %0, %34, %cst_37 {dimension_numbers = #tpu.dot_dimension_numbers<[1], [0], [0], [1], [0, 0, 1, 1], [], []>} : vector<16x48xf32>, vector<48x18xf32>, vector<16x18xf32> -> vector<16x18xf32>
    %cst_38 = arith.constant dense<0.000000e+00> : vector<16x48xf32>
    %36 = tpu.matmul %32, %0, %cst_38 {dimension_numbers = #tpu.dot_dimension_numbers<[1], [0], [0], [1], [0, 0, 1, 1], [], []>} : vector<16x16xf32>, vector<16x48xf32>, vector<16x48xf32> -> vector<16x48xf32>
    %c1_39 = arith.constant 1 : index
    %c1_40 = arith.constant 1 : index
    %c0_41 = arith.constant 0 : index
    %c0_42 = arith.constant 0 : index
    %37 = vector.load %arg3[%c1_39, %c1_40, %c0_41, %c0_42] : memref<2x4x48x18xf32, #tpu.memory_space<vmem>>, vector<1x1x48x18xf32>
    %38 = vector.shape_cast %37 : vector<1x1x48x18xf32> to vector<48x18xf32>
    %cst_43 = arith.constant dense<0.000000e+00> : vector<16x18xf32>
    %39 = tpu.matmul %36, %38, %cst_43 {dimension_numbers = #tpu.dot_dimension_numbers<[1], [0], [0], [1], [0, 0, 1, 1], [], []>} : vector<16x48xf32>, vector<48x18xf32>, vector<16x18xf32> -> vector<16x18xf32>
    %40 = arith.addf %35, %39 : vector<16x18xf32>
    %cst_44 = arith.constant dense<0.000000e+00> : vector<16x48xf32>
    %41 = tpu.matmul %32, %36, %cst_44 {dimension_numbers = #tpu.dot_dimension_numbers<[1], [0], [0], [1], [0, 0, 1, 1], [], []>} : vector<16x16xf32>, vector<16x48xf32>, vector<16x48xf32> -> vector<16x48xf32>
    %c1_45 = arith.constant 1 : index
    %c2_46 = arith.constant 2 : index
    %c0_47 = arith.constant 0 : index
    %c0_48 = arith.constant 0 : index
    %42 = vector.load %arg3[%c1_45, %c2_46, %c0_47, %c0_48] : memref<2x4x48x18xf32, #tpu.memory_space<vmem>>, vector<1x1x48x18xf32>
    %43 = vector.shape_cast %42 : vector<1x1x48x18xf32> to vector<48x18xf32>
    %cst_49 = arith.constant dense<0.000000e+00> : vector<16x18xf32>
    %44 = tpu.matmul %41, %43, %cst_49 {dimension_numbers = #tpu.dot_dimension_numbers<[1], [0], [0], [1], [0, 0, 1, 1], [], []>} : vector<16x48xf32>, vector<48x18xf32>, vector<16x18xf32> -> vector<16x18xf32>
    %45 = arith.addf %40, %44 : vector<16x18xf32>
    %cst_50 = arith.constant dense<0.000000e+00> : vector<16x48xf32>
    %46 = tpu.matmul %32, %41, %cst_50 {dimension_numbers = #tpu.dot_dimension_numbers<[1], [0], [0], [1], [0, 0, 1, 1], [], []>} : vector<16x16xf32>, vector<16x48xf32>, vector<16x48xf32> -> vector<16x48xf32>
    %c1_51 = arith.constant 1 : index
    %c3_52 = arith.constant 3 : index
    %c0_53 = arith.constant 0 : index
    %c0_54 = arith.constant 0 : index
    %47 = vector.load %arg3[%c1_51, %c3_52, %c0_53, %c0_54] : memref<2x4x48x18xf32, #tpu.memory_space<vmem>>, vector<1x1x48x18xf32>
    %48 = vector.shape_cast %47 : vector<1x1x48x18xf32> to vector<48x18xf32>
    %cst_55 = arith.constant dense<0.000000e+00> : vector<16x18xf32>
    %49 = tpu.matmul %46, %48, %cst_55 {dimension_numbers = #tpu.dot_dimension_numbers<[1], [0], [0], [1], [0, 0, 1, 1], [], []>} : vector<16x48xf32>, vector<48x18xf32>, vector<16x18xf32> -> vector<16x18xf32>
    %50 = arith.addf %45, %49 : vector<16x18xf32>
    %cst_56 = arith.constant 0.000000e+00 : f32
    %51 = vector.broadcast %cst_56 : f32 to vector<16x18xf32>
    %52 = arith.maximumf %50, %51 : vector<16x18xf32>
    %53 = vector.extract_strided_slice %52 {offsets = [0, 0], sizes = [16, 9], strides = [1, 1]} : vector<16x18xf32> to vector<16x9xf32>
    %c0_57 = arith.constant 0 : index
    %c16 = arith.constant 16 : index
    %c0_58 = arith.constant 0 : index
    %54 = vector.load %arg4[%c0_57, %c16, %c0_58] : memref<2x32x9xf32, #tpu.memory_space<vmem>>, vector<1x16x9xf32>
    %55 = vector.shape_cast %54 : vector<1x16x9xf32> to vector<16x9xf32>
    %56 = vector.shape_cast %53 : vector<16x9xf32> to vector<1x16x9xf32>
    tpu.vector_store %arg4[%c0_57, %c16, %c0_58], %56 {strides = array<i32>} : memref<2x32x9xf32, #tpu.memory_space<vmem>>, vector<1x16x9xf32>,
    %57 = vector.extract_strided_slice %52 {offsets = [0, 9], sizes = [16, 9], strides = [1, 1]} : vector<16x18xf32> to vector<16x9xf32>
    %c1_59 = arith.constant 1 : index
    %c16_60 = arith.constant 16 : index
    %c0_61 = arith.constant 0 : index
    %58 = vector.load %arg4[%c1_59, %c16_60, %c0_61] : memref<2x32x9xf32, #tpu.memory_space<vmem>>, vector<1x16x9xf32>
    %59 = vector.shape_cast %58 : vector<1x16x9xf32> to vector<16x9xf32>
    %60 = vector.shape_cast %57 : vector<16x9xf32> to vector<1x16x9xf32>
    tpu.vector_store %arg4[%c1_59, %c16_60, %c0_61], %60 {strides = array<i32>} : memref<2x32x9xf32, #tpu.memory_space<vmem>>, vector<1x16x9xf32>,
    return
  }
  func.func @transform_0(%arg0: i32) -> (i32, i32) {
    %c0_i32 = arith.constant 0 : i32
    %c0_i32_0 = arith.constant 0 : i32
    %c0_i32_1 = arith.constant 0 : i32
    return %c0_i32, %c0_i32_0 : i32, i32
  }
  func.func @transform_1(%arg0: i32) -> (i32, i32, i32) {
    %c0_i32 = arith.constant 0 : i32
    %c0_i32_0 = arith.constant 0 : i32
    %c0_i32_1 = arith.constant 0 : i32
    return %arg0, %c0_i32, %c0_i32_0 : i32, i32, i32
  }
  func.func @transform_2(%arg0: i32) -> (i32, i32, i32, i32) {
    %c0_i32 = arith.constant 0 : i32
    %c0_i32_0 = arith.constant 0 : i32
    %c0_i32_1 = arith.constant 0 : i32
    %c0_i32_2 = arith.constant 0 : i32
    return %arg0, %c0_i32, %c0_i32_0, %c0_i32_1 : i32, i32, i32, i32
  }
  func.func @transform_3(%arg0: i32) -> (i32, i32, i32) {
    %c0_i32 = arith.constant 0 : i32
    %c0_i32_0 = arith.constant 0 : i32
    %c0_i32_1 = arith.constant 0 : i32
    return %c0_i32, %arg0, %c0_i32_0 : i32, i32, i32
  }
}

</mosaic_0001>

<llo_original>
// kernel: tpu_custom_call.1
$region0: #{tpu_custom_call.1}
  #allocation0 [shape = 'u32[]', space=smem, size = 0x4, offset = 0x4, fixed_abs, tag = 'smem constant byte address 0x4 - core index']
  #allocation1 [shape = 'u32[72,128]{1,0:T(1,128)}', space=vmem, size = 0x9000, scoped, tag = 'internal scratch']
  %s0 = inlined_call_operand.vmem [shape: f32[16,48], index: 0, kind: input, shape index: {}]
  %s1 = inlined_call_operand.vmem [shape: f32[4,16,16], index: 1, kind: input, shape index: {}]
  %s2 = inlined_call_operand.vmem [shape: f32[4,4,48,18], index: 2, kind: input, shape index: {}]
  %s3 = inlined_call_operand.vmem [shape: f32[2,64,9], index: 3, kind: output, shape index: {}]
  %s4 = sld [smem:[#allocation0]]
  $region79: #{tpu_custom_call.1} parent=0
    _
  %s6 = ssub.s32 1, %s4
  %s7 = scalar_select 0, %s6, %s4
  $region1: #{tpu_custom_call.1} parent=0
    #allocation2 [shape = 'u8[65536]{0}', space=vmem, size = 0x10000, scoped, tag = 'output window, operand 0']
    loop: start=0, step=1, limit=4
    $region2: #{tpu_custom_call.1} parent=1 // loop_pre_header
      _
    $region3: #{tpu_custom_call.1} parent=1 // loop_header
      %s9 = sphi 0, %s13
      %p10 = scmp.ge.s32.totalorder %s9, 4
      %s17 = sphi 0, %s17
      %s19 = sphi 0, %s17
      %s20 = sphi 0, %s19
      %s34 = sphi 0, %s20
      %s40 = sphi 0, %s42
      %s43 = sphi 0, %s40
      %s44 = sphi 0, %s43
      %s60 = sphi 0, %s44
      %s66 = sphi 0, %s68
      %s69 = sphi 0, %s66
      %s70 = sphi 0, %s69
      %s86 = sphi 0, %s70
      %s92 = sphi 0, %s94
      %s95 = sphi 0, %s92
      %s96 = sphi 0, %s95
      %s112 = sphi 0, %s96
    $region4: #{tpu_custom_call.1} parent=1 // loop_header_branch
      %12 = sbr.rel (%p10) target = $region8
    $region5: #{tpu_custom_call.1} parent=1 // loop_body
      %s14 = ssub.s32 %s9, 1
      %s15 = ssub.s32 %s9, 2
      %s16 = sadd.s32 %s9, 1
      %s18 = sadd.s32 %s17, 1
      %p21 = scmp.eq.s32.totalorder %s9, 1
      %p22 = scmp.ne.s32.totalorder %s17, %s19
      %p23 = scmp.eq.s32.totalorder %s9, 0
      %p24 = por %p22, %p23
      %p25 = scmp.ne.s32.totalorder %s17, %s19
      %p26 = scmp.eq.s32.totalorder %s14, 1
      %p27 = por %p25, %p26
      %p28 = scmp.ne.s32.totalorder %s19, %s20
      %p29 = scmp.eq.s32.totalorder %s14, 0
      %p30 = por %p28, %p29
      %p31 = scmp.ne.s32.totalorder %s19, %s20
      %p32 = scmp.eq.s32.totalorder %s15, 1
      %p33 = por %p31, %p32
      %p35 = scmp.ne.s32.totalorder %s20, %s34
      %p36 = scmp.eq.s32.totalorder %s15, 0
      %p37 = por %p35, %p36
      %s38 = ssub.s32 %s9, %s16
      %p39 = scmp.eq.s32.totalorder %s38, 0
      %s41 = sadd.s32 %s40, 1
      %s42 = scalar_select %p39, %s40, %s41
      %p45 = pneg %p39
      %p46 = scmp.eq.s32.totalorder %s9, 1
      %p47 = por %p45, %p46
      %p48 = scmp.ne.s32.totalorder %s40, %s43
      %p49 = scmp.eq.s32.totalorder %s9, 0
      %p50 = por %p48, %p49
      %p51 = scmp.ne.s32.totalorder %s40, %s43
      %p52 = scmp.eq.s32.totalorder %s14, 1
      %p53 = por %p51, %p52
      %p54 = scmp.ne.s32.totalorder %s43, %s44
      %p55 = scmp.eq.s32.totalorder %s14, 0
      %p56 = por %p54, %p55
      %p57 = scmp.ne.s32.totalorder %s43, %s44
      %p58 = scmp.eq.s32.totalorder %s15, 1
      %p59 = por %p57, %p58
      %p61 = scmp.ne.s32.totalorder %s44, %s60
      %p62 = scmp.eq.s32.totalorder %s15, 0
      %p63 = por %p61, %p62
      %s64 = ssub.s32 %s9, %s16
      %p65 = scmp.eq.s32.totalorder %s64, 0
      %s67 = sadd.s32 %s66, 1
      %s68 = scalar_select %p65, %s66, %s67
      %p71 = pneg %p65
      %p72 = scmp.eq.s32.totalorder %s9, 1
      %p73 = por %p71, %p72
      %p74 = scmp.ne.s32.totalorder %s66, %s69
      %p75 = scmp.eq.s32.totalorder %s9, 0
      %p76 = por %p74, %p75
      %p77 = scmp.ne.s32.totalorder %s66, %s69
      %p78 = scmp.eq.s32.totalorder %s14, 1
      %p79 = por %p77, %p78
      %p80 = scmp.ne.s32.totalorder %s69, %s70
      %p81 = scmp.eq.s32.totalorder %s14, 0
      %p82 = por %p80, %p81
      %p83 = scmp.ne.s32.totalorder %s69, %s70
      %p84 = scmp.eq.s32.totalorder %s15, 1
      %p85 = por %p83, %p84
      %p87 = scmp.ne.s32.totalorder %s70, %s86
      %p88 = scmp.eq.s32.totalorder %s15, 0
      %p89 = por %p87, %p88
      %s90 = ssub.s32 %s9, %s16
      %p91 = scmp.eq.s32.totalorder %s90, 0
      %s93 = sadd.s32 %s92, 1
      %s94 = scalar_select %p91, %s92, %s93
      %p97 = pneg %p91
      %p98 = scmp.eq.s32.totalorder %s9, 1
      %p99 = por %p97, %p98
      %p100 = scmp.ne.s32.totalorder %s92, %s95
      %p101 = scmp.eq.s32.totalorder %s9, 0
      %p102 = por %p100, %p101
      %p103 = scmp.ne.s32.totalorder %s92, %s95
      %p104 = scmp.eq.s32.totalorder %s14, 1
      %p105 = por %p103, %p104
      %p106 = scmp.ne.s32.totalorder %s95, %s96
      %p107 = scmp.eq.s32.totalorder %s14, 0
      %p108 = por %p106, %p107
      %p109 = scmp.ne.s32.totalorder %s95, %s96
      %p110 = scmp.eq.s32.totalorder %s15, 1
      %p111 = por %p109, %p110
      %p113 = scmp.ne.s32.totalorder %s96, %s112
      %p114 = scmp.eq.s32.totalorder %s15, 0
      %p115 = por %p113, %p114
      %p116 = scmp.le.s32.totalorder 1, %s9
      %p117 = scmp.lt.s32.totalorder %s9, 3
      %p118 = pnand %p116, %p117
      %p119 = pneg %p118
      // Predicated region
      $region9: #{tpu_custom_call.1} parent=5 // pred_check
        _
      $region10: #{tpu_custom_call.1} parent=5 // pred_check_branch
        %121 = sbr.rel (%p118) target = $region12
      $region11: #{tpu_custom_call.1} parent=5 // pred_region
        %s122 = ssub.s32 %s9, 1
        // Predicated region
        $region13: #{tpu_custom_call.1} parent=11 // pred_check
          %p123 = pneg %p30
        $region14: #{tpu_custom_call.1} parent=11 // pred_check_branch
          %125 = sbr.rel (%p123) target = $region16
        $region15: #{tpu_custom_call.1} parent=11 // pred_region
          _
        $region16: #{tpu_custom_call.1} parent=11 // pred_fallthru
          _
      $region12: #{tpu_custom_call.1} parent=5 // pred_fallthru
        _
      %p126 = scmp.lt.s32.totalorder %s9, 2
      // Predicated region
      $region17: #{tpu_custom_call.1} parent=5 // pred_check
        %p127 = pneg %p126
      $region18: #{tpu_custom_call.1} parent=5 // pred_check_branch
        %129 = sbr.rel (%p127) target = $region20
      $region19: #{tpu_custom_call.1} parent=5 // pred_region
        // Predicated region
        $region21: #{tpu_custom_call.1} parent=19 // pred_check
          %p130 = pneg %p50
        $region22: #{tpu_custom_call.1} parent=19 // pred_check_branch
          %132 = sbr.rel (%p130) target = $region24
        $region23: #{tpu_custom_call.1} parent=19 // pred_region
          %s133 = smul.u32 2, %s9
          %p134 = scmp.lt.s32.totalorder %s133, 3
          %s135 = scalar_select %p134, %s133, 3
          %s136 = smul.addr %s135, 2
          %s137 = smul.addr %s136, 8
          %s138 = scalar_lea.vmem %s1, %s137
          %s139 = smul.u32 2, %s9
        $region24: #{tpu_custom_call.1} parent=19 // pred_fallthru
          _
        // Predicated region
        $region25: #{tpu_custom_call.1} parent=19 // pred_check
          %p140 = pneg %p76
        $region26: #{tpu_custom_call.1} parent=19 // pred_check_branch
          %142 = sbr.rel (%p140) target = $region28
        $region27: #{tpu_custom_call.1} parent=19 // pred_region
          %s143 = smul.u32 2, %s9
          %p144 = scmp.lt.s32.totalorder %s143, 3
          %s145 = scalar_select %p144, %s143, 3
          %s146 = smul.addr %s145, 24
          %s147 = smul.addr %s146, 8
          %s148 = scalar_lea.vmem %s2, %s147
          %s149 = smul.u32 2, %s9
        $region28: #{tpu_custom_call.1} parent=19 // pred_fallthru
          _
      $region20: #{tpu_custom_call.1} parent=5 // pred_fallthru
        _
      %p150 = scmp.le.s32.totalorder 1, %s9
      %p151 = scmp.lt.s32.totalorder %s9, 3
      %p152 = pnand %p150, %p151
      %p153 = pneg %p152
      // Predicated region
      $region29: #{tpu_custom_call.1} parent=5 // pred_check
        _
      $region30: #{tpu_custom_call.1} parent=5 // pred_check_branch
        %155 = sbr.rel (%p152) target = $region32
      $region31: #{tpu_custom_call.1} parent=5 // pred_region
        %s156 = ssub.s32 %s9, 1
        %p157 = pneg %p30
        %p158 = pneg %p27
        %s159 = smul.u32 2, %s14
        %p160 = scmp.lt.s32.totalorder %s159, 3
        %s161 = scalar_select %p160, %s159, 3
        %s162 = smul.addr %s161, 2
        %s163 = smul.addr %s162, 8
        %s164 = scalar_lea.vmem %s1, %s163
        %p165 = pneg %p56
        %p166 = pneg %p53
        %s167 = smul.u32 2, %s14
        %p168 = scmp.lt.s32.totalorder %s167, 3
        %s169 = scalar_select %p168, %s167, 3
        %s170 = smul.addr %s169, 24
        %s171 = smul.addr %s170, 8
        %s172 = scalar_lea.vmem %s2, %s171
        %p173 = pneg %p82
        %p174 = pneg %p79
        %p175 = pneg %p108
        %p176 = pneg %p105
        %s177 = sand.u32 %s95, 1
        %s178 = sand.u32 %s95, 1
        %s179 = smul.addr %s178, 64
        %s180 = scalar_lea.vmem [#allocation2], %s179
        %s181 = smul.u32 2, %s14
        %p182 = scmp.lt.s32.totalorder %s181, 3
        %s183 = scalar_select %p182, %s181, 3
        %s184 = smul.addr %s183, 2
        %s185 = smul.addr %s184, 8
        %s186 = scalar_lea.vmem %s1, %s185
        %s187 = smul.u32 2, %s14
        %s188 = smul.u32 2, %s14
        %p189 = scmp.lt.s32.totalorder %s188, 3
        %s190 = scalar_select %p189, %s188, 3
        %s191 = smul.addr %s190, 24
        %s192 = smul.addr %s191, 8
        %s193 = scalar_lea.vmem %s2, %s192
        %s194 = smul.u32 2, %s14
        %s195 = smul.u32 4, %s14
        %v196 = vld [vmem:[%s0] sm:$0xff]
        %v197 = vld [vmem:[%s0 + $0x8] sm:$0xff]
        %v198 = vld [vmem:[%s186] sm:$0xff]
        %v199 = vld [vmem:[%s186 + $0x8] sm:$0xff]
        %v200 = vld [vmem:[%s193] sm:$0xff]
        %v201 = vld [vmem:[%s193 + $0x8] sm:$0xff]
        %v202 = vld [vmem:[%s193 + $0x10] sm:$0xff]
        %v203 = vld [vmem:[%s193 + $0x18] sm:$0xff]
        %v204 = vld [vmem:[%s193 + $0x20] sm:$0xff]
        %v205 = vld [vmem:[%s193 + $0x28] sm:$0xff]
        %vm206 = vcmask 130048
        %v208 = vsel %vm206, %v198, 0
        %v211 = vsel %vm206, %v199, 0
        %213 = vmatpush.msra.mxu0 0.0
        %214 = vmatpush.msra.mxu0 0.0
        %215 = vmatpush.msra.mxu0 0.0
        %216 = vmatpush.msra.mxu0 0.0
        %217 = vmatpush.msra.mxu0 0.0
        %218 = vmatpush.msra.mxu0 0.0
        %219 = vmatpush.msra.mxu0 0.0
        %220 = vmatpush.msra.mxu0 0.0
        %221 = vmatpush.msra.mxu0 0.0
        %222 = vmatpush.msra.mxu0 0.0
        %223 = vmatpush.msra.mxu0 0.0
        %224 = vmatpush.msra.mxu0 0.0
        %225 = vmatpush.msra.mxu0 0.0
        %226 = vmatpush.msra.mxu0 0.0
        %227 = vmatpush.msra.mxu0 %v197
        %228 = vmatpush.msra.mxu0 %v196
        %229 = vmatmul.f32.gmra.mxu0 %v208
        %v230 = vpop.f32.mrf.mxu0
        %v231 = vadd.f32 0.0, %v230
        %232 = vmatmul.f32.gmra.mxu0 %v211
        %v233 = vpop.f32.mrf.mxu0
        %v234 = vadd.f32 0.0, %v233
        %235 = vdwg.mxu0
        %s236 = scalar_lea.vmem %s193, 48
        %v237 = vld [vmem:[%s236] sm:$0xff]
        %v238 = vld [vmem:[%s236 + $0x8] sm:$0xff]
        %v239 = vld [vmem:[%s236 + $0x10] sm:$0xff]
        %v240 = vld [vmem:[%s236 + $0x18] sm:$0xff]
        %v241 = vld [vmem:[%s236 + $0x20] sm:$0xff]
        %v242 = vld [vmem:[%s236 + $0x28] sm:$0xff]
        %vm243 = vcmask 392192
        %v245 = vsel %vm243, %v231, 0
        %v248 = vsel %vm243, %v234, 0
        %250 = vmatpush.msra.mxu0 0.0
        %251 = vmatpush.msra.mxu0 0.0
        %252 = vmatpush.msra.mxu0 0.0
        %253 = vmatpush.msra.mxu0 0.0
        %254 = vmatpush.msra.mxu0 0.0
        %255 = vmatpush.msra.mxu0 0.0
        %256 = vmatpush.msra.mxu0 0.0
        %257 = vmatpush.msra.mxu0 0.0
        %258 = vmatpush.msra.mxu0 0.0
        %259 = vmatpush.msra.mxu0 0.0
        %260 = vmatpush.msra.mxu0 %v242
        %261 = vmatpush.msra.mxu0 %v241
        %262 = vmatpush.msra.mxu0 %v240
        %263 = vmatpush.msra.mxu0 %v239
        %264 = vmatpush.msra.mxu0 %v238
        %265 = vmatpush.msra.mxu0 %v237
        %266 = vmatmul.f32.gmra.mxu0 %v245
        %v267 = vpop.f32.mrf.mxu0
        %v268 = vadd.f32 0.0, %v267
        %269 = vmatmul.f32.gmra.mxu0 %v248
        %v270 = vpop.f32.mrf.mxu0
        %v271 = vadd.f32 0.0, %v270
        %272 = vdwg.mxu0
        %v274 = vsel %vm243, %v196, 0
        %v277 = vsel %vm243, %v197, 0
        %279 = vmatpush.msra.mxu0 0.0
        %280 = vmatpush.msra.mxu0 0.0
        %281 = vmatpush.msra.mxu0 0.0
        %282 = vmatpush.msra.mxu0 0.0
        %283 = vmatpush.msra.mxu0 0.0
        %284 = vmatpush.msra.mxu0 0.0
        %285 = vmatpush.msra.mxu0 0.0
        %286 = vmatpush.msra.mxu0 0.0
        %287 = vmatpush.msra.mxu0 0.0
        %288 = vmatpush.msra.mxu0 0.0
        %289 = vmatpush.msra.mxu0 %v205
        %290 = vmatpush.msra.mxu0 %v204
        %291 = vmatpush.msra.mxu0 %v203
        %292 = vmatpush.msra.mxu0 %v202
        %293 = vmatpush.msra.mxu0 %v201
        %294 = vmatpush.msra.mxu0 %v200
        %295 = vmatmul.f32.gmra.mxu0 %v274
        %v296 = vpop.f32.mrf.mxu0
        %v297 = vadd.f32 %v268, %v296
        %298 = vmatmul.f32.gmra.mxu0 %v277
        %v299 = vpop.f32.mrf.mxu0
        %v300 = vadd.f32 %v271, %v299
        %301 = vdwg.mxu0
        %302 = vmatpush.msra.mxu0 0.0
        %303 = vmatpush.msra.mxu0 0.0
        %304 = vmatpush.msra.mxu0 0.0
        %305 = vmatpush.msra.mxu0 0.0
        %306 = vmatpush.msra.mxu0 0.0
        %307 = vmatpush.msra.mxu0 0.0
        %308 = vmatpush.msra.mxu0 0.0
        %309 = vmatpush.msra.mxu0 0.0
        %310 = vmatpush.msra.mxu0 0.0
        %311 = vmatpush.msra.mxu0 0.0
        %312 = vmatpush.msra.mxu0 0.0
        %313 = vmatpush.msra.mxu0 0.0
        %314 = vmatpush.msra.mxu0 0.0
        %315 = vmatpush.msra.mxu0 0.0
        %316 = vmatpush.msra.mxu0 %v234
        %317 = vmatpush.msra.mxu0 %v231
        %318 = vmatmul.f32.gmra.mxu0 %v208
        %v319 = vpop.f32.mrf.mxu0
        %v320 = vadd.f32 0.0, %v319
        %321 = vmatmul.f32.gmra.mxu0 %v211
        %v322 = vpop.f32.mrf.mxu0
        %v323 = vadd.f32 0.0, %v322
        %324 = vdwg.mxu0
        %s325 = scalar_lea.vmem %s193, 96
        %v326 = vld [vmem:[%s325] sm:$0xff]
        %v327 = vld [vmem:[%s325 + $0x8] sm:$0xff]
        %v328 = vld [vmem:[%s325 + $0x10] sm:$0xff]
        %v329 = vld [vmem:[%s325 + $0x18] sm:$0xff]
        %v330 = vld [vmem:[%s325 + $0x20] sm:$0xff]
        %v331 = vld [vmem:[%s325 + $0x28] sm:$0xff]
        %v333 = vsel %vm243, %v320, 0
        %v336 = vsel %vm243, %v323, 0
        %338 = vmatpush.msra.mxu0 0.0
        %339 = vmatpush.msra.mxu0 0.0
        %340 = vmatpush.msra.mxu0 0.0
        %341 = vmatpush.msra.mxu0 0.0
        %342 = vmatpush.msra.mxu0 0.0
        %343 = vmatpush.msra.mxu0 0.0
        %344 = vmatpush.msra.mxu0 0.0
        %345 = vmatpush.msra.mxu0 0.0
        %346 = vmatpush.msra.mxu0 0.0
        %347 = vmatpush.msra.mxu0 0.0
        %348 = vmatpush.msra.mxu0 %v331
        %349 = vmatpush.msra.mxu0 %v330
        %350 = vmatpush.msra.mxu0 %v329
        %351 = vmatpush.msra.mxu0 %v328
        %352 = vmatpush.msra.mxu0 %v327
        %353 = vmatpush.msra.mxu0 %v326
        %354 = vmatmul.f32.gmra.mxu0 %v333
        %v355 = vpop.f32.mrf.mxu0
        %v356 = vadd.f32 0.0, %v355
        %357 = vmatmul.f32.gmra.mxu0 %v336
        %v358 = vpop.f32.mrf.mxu0
        %v359 = vadd.f32 0.0, %v358
        %360 = vdwg.mxu0
        %v361 = vadd.f32 %v297, %v356
        %v362 = vadd.f32 %v300, %v359
        %363 = vmatpush.msra.mxu0 0.0
        %364 = vmatpush.msra.mxu0 0.0
        %365 = vmatpush.msra.mxu0 0.0
        %366 = vmatpush.msra.mxu0 0.0
        %367 = vmatpush.msra.mxu0 0.0
        %368 = vmatpush.msra.mxu0 0.0
        %369 = vmatpush.msra.mxu0 0.0
        %370 = vmatpush.msra.mxu0 0.0
        %371 = vmatpush.msra.mxu0 0.0
        %372 = vmatpush.msra.mxu0 0.0
        %373 = vmatpush.msra.mxu0 0.0
        %374 = vmatpush.msra.mxu0 0.0
        %375 = vmatpush.msra.mxu0 0.0
        %376 = vmatpush.msra.mxu0 0.0
        %377 = vmatpush.msra.mxu0 %v323
        %378 = vmatpush.msra.mxu0 %v320
        %379 = vmatmul.f32.gmra.mxu0 %v208
        %v380 = vpop.f32.mrf.mxu0
        %v381 = vadd.f32 0.0, %v380
        %382 = vmatmul.f32.gmra.mxu0 %v211
        %v383 = vpop.f32.mrf.mxu0
        %v384 = vadd.f32 0.0, %v383
        %385 = vdwg.mxu0
        %s386 = scalar_lea.vmem %s193, 144
        %v387 = vld [vmem:[%s386] sm:$0xff]
        %v388 = vld [vmem:[%s386 + $0x8] sm:$0xff]
        %v389 = vld [vmem:[%s386 + $0x10] sm:$0xff]
        %v390 = vld [vmem:[%s386 + $0x18] sm:$0xff]
        %v391 = vld [vmem:[%s386 + $0x20] sm:$0xff]
        %v392 = vld [vmem:[%s386 + $0x28] sm:$0xff]
        %v394 = vsel %vm243, %v381, 0
        %v397 = vsel %vm243, %v384, 0
        %399 = vmatpush.msra.mxu0 0.0
        %400 = vmatpush.msra.mxu0 0.0
        %401 = vmatpush.msra.mxu0 0.0
        %402 = vmatpush.msra.mxu0 0.0
        %403 = vmatpush.msra.mxu0 0.0
        %404 = vmatpush.msra.mxu0 0.0
        %405 = vmatpush.msra.mxu0 0.0
        %406 = vmatpush.msra.mxu0 0.0
        %407 = vmatpush.msra.mxu0 0.0
        %408 = vmatpush.msra.mxu0 0.0
        %409 = vmatpush.msra.mxu0 %v392
        %410 = vmatpush.msra.mxu0 %v391
        %411 = vmatpush.msra.mxu0 %v390
        %412 = vmatpush.msra.mxu0 %v389
        %413 = vmatpush.msra.mxu0 %v388
        %414 = vmatpush.msra.mxu0 %v387
        %415 = vmatmul.f32.gmra.mxu0 %v394
        %v416 = vpop.f32.mrf.mxu0
        %v417 = vadd.f32 0.0, %v416
        %418 = vmatmul.f32.gmra.mxu0 %v397
        %v419 = vpop.f32.mrf.mxu0
        %v420 = vadd.f32 0.0, %v419
        %421 = vdwg.mxu0
        %v422 = vadd.f32 %v361, %v417
        %v423 = vadd.f32 %v362, %v420
        %v424 = vmax.f32 %v422, 0.0
        %v425 = vmax.f32 %v423, 0.0
        %vm426 = vcmask 72704
        %427 = vst.msk [vmem:[%s180] sm:$0xff] %vm426, %v424
        %428 = vst.msk [vmem:[%s180 + $0x8] sm:$0xff] %vm426, %v425
        %431 = vrot.lane.b32.xlu0 %v424, 119
        %v432 = vpop.permute.xlu0 %431
        %433 = vrot.lane.b32.xlu0 %v425, 119
        %v434 = vpop.permute.xlu0 %433
        %s437 = scalar_lea.vmem %s180, 32 [#allocation2]
        %438 = vst.msk [vmem:[%s437] sm:$0xff] %vm426, %v432
        %439 = vst.msk [vmem:[%s437 + $0x8] sm:$0xff] %vm426, %v434
        %s440 = scalar_lea.vmem %s186, 16
        %v441 = vld [vmem:[%s440] sm:$0xff]
        %v442 = vld [vmem:[%s440 + $0x8] sm:$0xff]
        %s443 = scalar_lea.vmem %s193, 192
        %v444 = vld [vmem:[%s443] sm:$0xff]
        %v445 = vld [vmem:[%s443 + $0x8] sm:$0xff]
        %v446 = vld [vmem:[%s443 + $0x10] sm:$0xff]
        %v447 = vld [vmem:[%s443 + $0x18] sm:$0xff]
        %v448 = vld [vmem:[%s443 + $0x20] sm:$0xff]
        %v449 = vld [vmem:[%s443 + $0x28] sm:$0xff]
        %v451 = vsel %vm206, %v441, 0
        %v454 = vsel %vm206, %v442, 0
        %456 = vmatpush.msra.mxu0 0.0
        %457 = vmatpush.msra.mxu0 0.0
        %458 = vmatpush.msra.mxu0 0.0
        %459 = vmatpush.msra.mxu0 0.0
        %460 = vmatpush.msra.mxu0 0.0
        %461 = vmatpush.msra.mxu0 0.0
        %462 = vmatpush.msra.mxu0 0.0
        %463 = vmatpush.msra.mxu0 0.0
        %464 = vmatpush.msra.mxu0 0.0
        %465 = vmatpush.msra.mxu0 0.0
        %466 = vmatpush.msra.mxu0 0.0
        %467 = vmatpush.msra.mxu0 0.0
        %468 = vmatpush.msra.mxu0 0.0
        %469 = vmatpush.msra.mxu0 0.0
        %470 = vmatpush.msra.mxu0 %v197
        %471 = vmatpush.msra.mxu0 %v196
        %472 = vmatmul.f32.gmra.mxu0 %v451
        %v473 = vpop.f32.mrf.mxu0
        %v474 = vadd.f32 0.0, %v473
        %475 = vmatmul.f32.gmra.mxu0 %v454
        %v476 = vpop.f32.mrf.mxu0
        %v477 = vadd.f32 0.0, %v476
        %478 = vdwg.mxu0
        %s479 = scalar_lea.vmem %s193, 240
        %v480 = vld [vmem:[%s479] sm:$0xff]
        %v481 = vld [vmem:[%s479 + $0x8] sm:$0xff]
        %v482 = vld [vmem:[%s479 + $0x10] sm:$0xff]
        %v483 = vld [vmem:[%s479 + $0x18] sm:$0xff]
        %v484 = vld [vmem:[%s479 + $0x20] sm:$0xff]
        %v485 = vld [vmem:[%s479 + $0x28] sm:$0xff]
        %v487 = vsel %vm243, %v474, 0
        %v490 = vsel %vm243, %v477, 0
        %492 = vmatpush.msra.mxu0 0.0
        %493 = vmatpush.msra.mxu0 0.0
        %494 = vmatpush.msra.mxu0 0.0
        %495 = vmatpush.msra.mxu0 0.0
        %496 = vmatpush.msra.mxu0 0.0
        %497 = vmatpush.msra.mxu0 0.0
        %498 = vmatpush.msra.mxu0 0.0
        %499 = vmatpush.msra.mxu0 0.0
        %500 = vmatpush.msra.mxu0 0.0
        %501 = vmatpush.msra.mxu0 0.0
        %502 = vmatpush.msra.mxu0 %v485
        %503 = vmatpush.msra.mxu0 %v484
        %504 = vmatpush.msra.mxu0 %v483
        %505 = vmatpush.msra.mxu0 %v482
        %506 = vmatpush.msra.mxu0 %v481
        %507 = vmatpush.msra.mxu0 %v480
        %508 = vmatmul.f32.gmra.mxu0 %v487
        %v509 = vpop.f32.mrf.mxu0
        %v510 = vadd.f32 0.0, %v509
        %511 = vmatmul.f32.gmra.mxu0 %v490
        %v512 = vpop.f32.mrf.mxu0
        %v513 = vadd.f32 0.0, %v512
        %514 = vdwg.mxu0
        %515 = vmatpush.msra.mxu0 0.0
        %516 = vmatpush.msra.mxu0 0.0
        %517 = vmatpush.msra.mxu0 0.0
        %518 = vmatpush.msra.mxu0 0.0
        %519 = vmatpush.msra.mxu0 0.0
        %520 = vmatpush.msra.mxu0 0.0
        %521 = vmatpush.msra.mxu0 0.0
        %522 = vmatpush.msra.mxu0 0.0
        %523 = vmatpush.msra.mxu0 0.0
        %524 = vmatpush.msra.mxu0 0.0
        %525 = vmatpush.msra.mxu0 %v449
        %526 = vmatpush.msra.mxu0 %v448
        %527 = vmatpush.msra.mxu0 %v447
        %528 = vmatpush.msra.mxu0 %v446
        %529 = vmatpush.msra.mxu0 %v445
        %530 = vmatpush.msra.mxu0 %v444
        %531 = vmatmul.f32.gmra.mxu0 %v274
        %v532 = vpop.f32.mrf.mxu0
        %v533 = vadd.f32 %v510, %v532
        %534 = vmatmul.f32.gmra.mxu0 %v277
        %v535 = vpop.f32.mrf.mxu0
        %v536 = vadd.f32 %v513, %v535
        %537 = vdwg.mxu0
        %538 = vmatpush.msra.mxu0 0.0
        %539 = vmatpush.msra.mxu0 0.0
        %540 = vmatpush.msra.mxu0 0.0
        %541 = vmatpush.msra.mxu0 0.0
        %542 = vmatpush.msra.mxu0 0.0
        %543 = vmatpush.msra.mxu0 0.0
        %544 = vmatpush.msra.mxu0 0.0
        %545 = vmatpush.msra.mxu0 0.0
        %546 = vmatpush.msra.mxu0 0.0
        %547 = vmatpush.msra.mxu0 0.0
        %548 = vmatpush.msra.mxu0 0.0
        %549 = vmatpush.msra.mxu0 0.0
        %550 = vmatpush.msra.mxu0 0.0
        %551 = vmatpush.msra.mxu0 0.0
        %552 = vmatpush.msra.mxu0 %v477
        %553 = vmatpush.msra.mxu0 %v474
        %554 = vmatmul.f32.gmra.mxu0 %v451
        %v555 = vpop.f32.mrf.mxu0
        %v556 = vadd.f32 0.0, %v555
        %557 = vmatmul.f32.gmra.mxu0 %v454
        %v558 = vpop.f32.mrf.mxu0
        %v559 = vadd.f32 0.0, %v558
        %560 = vdwg.mxu0
        %s561 = scalar_lea.vmem %s193, 288
        %v562 = vld [vmem:[%s561] sm:$0xff]
        %v563 = vld [vmem:[%s561 + $0x8] sm:$0xff]
        %v564 = vld [vmem:[%s561 + $0x10] sm:$0xff]
        %v565 = vld [vmem:[%s561 + $0x18] sm:$0xff]
        %v566 = vld [vmem:[%s561 + $0x20] sm:$0xff]
        %v567 = vld [vmem:[%s561 + $0x28] sm:$0xff]
        %v569 = vsel %vm243, %v556, 0
        %v572 = vsel %vm243, %v559, 0
        %574 = vmatpush.msra.mxu0 0.0
        %575 = vmatpush.msra.mxu0 0.0
        %576 = vmatpush.msra.mxu0 0.0
        %577 = vmatpush.msra.mxu0 0.0
        %578 = vmatpush.msra.mxu0 0.0
        %579 = vmatpush.msra.mxu0 0.0
        %580 = vmatpush.msra.mxu0 0.0
        %581 = vmatpush.msra.mxu0 0.0
        %582 = vmatpush.msra.mxu0 0.0
        %583 = vmatpush.msra.mxu0 0.0
        %584 = vmatpush.msra.mxu0 %v567
        %585 = vmatpush.msra.mxu0 %v566
        %586 = vmatpush.msra.mxu0 %v565
        %587 = vmatpush.msra.mxu0 %v564
        %588 = vmatpush.msra.mxu0 %v563
        %589 = vmatpush.msra.mxu0 %v562
        %590 = vmatmul.f32.gmra.mxu0 %v569
        %v591 = vpop.f32.mrf.mxu0
        %v592 = vadd.f32 0.0, %v591
        %593 = vmatmul.f32.gmra.mxu0 %v572
        %v594 = vpop.f32.mrf.mxu0
        %v595 = vadd.f32 0.0, %v594
        %596 = vdwg.mxu0
        %v597 = vadd.f32 %v533, %v592
        %v598 = vadd.f32 %v536, %v595
        %599 = vmatpush.msra.mxu0 0.0
        %600 = vmatpush.msra.mxu0 0.0
        %601 = vmatpush.msra.mxu0 0.0
        %602 = vmatpush.msra.mxu0 0.0
        %603 = vmatpush.msra.mxu0 0.0
        %604 = vmatpush.msra.mxu0 0.0
        %605 = vmatpush.msra.mxu0 0.0
        %606 = vmatpush.msra.mxu0 0.0
        %607 = vmatpush.msra.mxu0 0.0
        %608 = vmatpush.msra.mxu0 0.0
        %609 = vmatpush.msra.mxu0 0.0
        %610 = vmatpush.msra.mxu0 0.0
        %611 = vmatpush.msra.mxu0 0.0
        %612 = vmatpush.msra.mxu0 0.0
        %613 = vmatpush.msra.mxu0 %v559
        %614 = vmatpush.msra.mxu0 %v556
        %615 = vmatmul.f32.gmra.mxu0 %v451
        %v616 = vpop.f32.mrf.mxu0
        %v617 = vadd.f32 0.0, %v616
        %618 = vmatmul.f32.gmra.mxu0 %v454
        %v619 = vpop.f32.mrf.mxu0
        %v620 = vadd.f32 0.0, %v619
        %621 = vdwg.mxu0
        %s622 = scalar_lea.vmem %s193, 336
        %v623 = vld [vmem:[%s622] sm:$0xff]
        %v624 = vld [vmem:[%s622 + $0x8] sm:$0xff]
        %v625 = vld [vmem:[%s622 + $0x10] sm:$0xff]
        %v626 = vld [vmem:[%s622 + $0x18] sm:$0xff]
        %v627 = vld [vmem:[%s622 + $0x20] sm:$0xff]
        %v628 = vld [vmem:[%s622 + $0x28] sm:$0xff]
        %v630 = vsel %vm243, %v617, 0
        %v633 = vsel %vm243, %v620, 0
        %635 = vmatpush.msra.mxu0 0.0
        %636 = vmatpush.msra.mxu0 0.0
        %637 = vmatpush.msra.mxu0 0.0
        %638 = vmatpush.msra.mxu0 0.0
        %639 = vmatpush.msra.mxu0 0.0
        %640 = vmatpush.msra.mxu0 0.0
        %641 = vmatpush.msra.mxu0 0.0
        %642 = vmatpush.msra.mxu0 0.0
        %643 = vmatpush.msra.mxu0 0.0
        %644 = vmatpush.msra.mxu0 0.0
        %645 = vmatpush.msra.mxu0 %v628
        %646 = vmatpush.msra.mxu0 %v627
        %647 = vmatpush.msra.mxu0 %v626
        %648 = vmatpush.msra.mxu0 %v625
        %649 = vmatpush.msra.mxu0 %v624
        %650 = vmatpush.msra.mxu0 %v623
        %651 = vmatmul.f32.gmra.mxu0 %v630
        %v652 = vpop.f32.mrf.mxu0
        %v653 = vadd.f32 0.0, %v652
        %654 = vmatmul.f32.gmra.mxu0 %v633
        %v655 = vpop.f32.mrf.mxu0
        %v656 = vadd.f32 0.0, %v655
        %657 = vdwg.mxu0
        %v658 = vadd.f32 %v597, %v653
        %v659 = vadd.f32 %v598, %v656
        %v660 = vmax.f32 %v658, 0.0
        %v661 = vmax.f32 %v659, 0.0
        %662 = vst.msk [vmem:[%s180 + $0x10] sm:$0xff] %vm426, %v660
        %663 = vst.msk [vmem:[%s180 + $0x18] sm:$0xff] %vm426, %v661
        %666 = vrot.lane.b32.xlu0 %v660, 119
        %v667 = vpop.permute.xlu0 %666
        %668 = vrot.lane.b32.xlu0 %v661, 119
        %v669 = vpop.permute.xlu0 %668
        %672 = vst.msk [vmem:[%s437 + $0x10] sm:$0xff] %vm426, %v667
        %673 = vst.msk [vmem:[%s437 + $0x18] sm:$0xff] %vm426, %v669
        %s674 = sand.u32 %s95, 1
        %s675 = sand.u32 %s95, 1
        %s676 = smul.addr %s675, 64
        %s677 = scalar_lea.vmem [#allocation2], %s676
        // Predicated region
        $region33: #{tpu_custom_call.1} parent=31 // pred_check
          %p678 = pneg %p105
        $region34: #{tpu_custom_call.1} parent=31 // pred_check_branch
          %680 = sbr.rel (%p678) target = $region36
        $region35: #{tpu_custom_call.1} parent=31 // pred_region
          %s681 = smul.u32 4, %s14
          %s682 = smul.addr %s681, 8
          %s683 = scalar_lea.vmem %s3, %s682
          // Predicated region
          $region37: #{tpu_custom_call.1} parent=35 // pred_check
            _
          $region38: #{tpu_custom_call.1} parent=35 // pred_check_branch
            %685 = sbr.rel (0) target = $region40
          $region39: #{tpu_custom_call.1} parent=35 // pred_region
            // Predicated region
            $region41: #{tpu_custom_call.1} parent=39 // pred_check
              _
            $region42: #{tpu_custom_call.1} parent=39 // pred_check_branch
              %687 = sbr.rel (0) target = $region44
            $region43: #{tpu_custom_call.1} parent=39 // pred_region
              // Predicated region
              $region56: #{tpu_custom_call.1} parent=43 // pred_check
                _
              $region57: #{tpu_custom_call.1} parent=43 // pred_check_branch
                %717 = sbr.rel (0) target = $region59
              $region58: #{tpu_custom_call.1} parent=43 // pred_region
                loop: start=0, step=1, limit=1
                $region60: #{tpu_custom_call.1} parent=58 // loop_pre_header
                  _
                $region61: #{tpu_custom_call.1} parent=58 // loop_header
                  %s719 = sphi 0, %s723
                  %p720 = scmp.ge.s32.totalorder %s719, 1
                  %s724 = sphi %s677, %s677
                  %s725 = sphi %s683, %s683
                $region62: #{tpu_custom_call.1} parent=58 // loop_header_branch
                  %722 = sbr.rel (%p720) target = $region66
                $region63: #{tpu_custom_call.1} parent=58 // loop_body
                  %v726 = vld [vmem:[%s724] sm:$0xff]
                  %727 = vst [vmem:[%s725] sm:$0xff] %v726
                  %v728 = vld [vmem:[%s724 + $0x8] sm:$0xff]
                  %729 = vst [vmem:[%s725 + $0x8] sm:$0xff] %v728
                  %v730 = vld [vmem:[%s724 + $0x10] sm:$0xff]
                  %731 = vst [vmem:[%s725 + $0x10] sm:$0xff] %v730
                  %v732 = vld [vmem:[%s724 + $0x18] sm:$0xff]
                  %733 = vst [vmem:[%s725 + $0x18] sm:$0xff] %v732
                  %v734 = vld [vmem:[%s724 + $0x20] sm:$0xff]
                  %735 = vst [vmem:[%s725 + $0x40] sm:$0xff] %v734
                  %v736 = vld [vmem:[%s724 + $0x28] sm:$0xff]
                  %737 = vst [vmem:[%s725 + $0x48] sm:$0xff] %v736
                  %v738 = vld [vmem:[%s724 + $0x30] sm:$0xff]
                  %739 = vst [vmem:[%s725 + $0x50] sm:$0xff] %v738
                  %v740 = vld [vmem:[%s724 + $0x38] sm:$0xff]
                  %741 = vst [vmem:[%s725 + $0x58] sm:$0xff] %v740
                $region64: #{tpu_custom_call.1} parent=58 // loop_footer
                  %s723 = sadd.s32 1, %s719
                $region65: #{tpu_custom_call.1} parent=58 // loop_footer_branch
                  %718 = sbr.rel target = $region61
                $region66: #{tpu_custom_call.1} parent=58 // loop_exit
                  _
              $region59: #{tpu_custom_call.1} parent=43 // pred_fallthru
                _
              // Predicated region
              $region67: #{tpu_custom_call.1} parent=43 // pred_check
                _
              $region68: #{tpu_custom_call.1} parent=43 // pred_check_branch
                %743 = sbr.rel target = $region70
              $region69: #{tpu_custom_call.1} parent=43 // pred_region
                _
              $region70: #{tpu_custom_call.1} parent=43 // pred_fallthru
                _
            $region44: #{tpu_custom_call.1} parent=39 // pred_fallthru
              _
            // Predicated region
            $region45: #{tpu_custom_call.1} parent=39 // pred_check
              _
            $region46: #{tpu_custom_call.1} parent=39 // pred_check_branch
              %689 = sbr.rel target = $region48
            $region47: #{tpu_custom_call.1} parent=39 // pred_region
              %s691 = ssub.s32 256, 1
              loop: start=0, step=1, limit=1
              $region49: #{tpu_custom_call.1} parent=47 // loop_pre_header
                _
              $region50: #{tpu_custom_call.1} parent=47 // loop_header
                %s693 = sphi 0, %s697
                %p694 = scmp.ge.s32.totalorder %s693, 1
                %s698 = sphi %s677, %s677
                %s699 = sphi %s683, %s683
              $region51: #{tpu_custom_call.1} parent=47 // loop_header_branch
                %696 = sbr.rel (%p694) target = $region55
              $region52: #{tpu_custom_call.1} parent=47 // loop_body
                %v700 = vld [vmem:[%s698] sm:%s691]
                %701 = vst [vmem:[%s699] sm:%s691] %v700
                %v702 = vld [vmem:[%s698 + $0x8] sm:%s691]
                %703 = vst [vmem:[%s699 + $0x8] sm:%s691] %v702
                %v704 = vld [vmem:[%s698 + $0x10] sm:%s691]
                %705 = vst [vmem:[%s699 + $0x10] sm:%s691] %v704
                %v706 = vld [vmem:[%s698 + $0x18] sm:%s691]
                %707 = vst [vmem:[%s699 + $0x18] sm:%s691] %v706
                %v708 = vld [vmem:[%s698 + $0x20] sm:%s691]
                %709 = vst [vmem:[%s699 + $0x40] sm:%s691] %v708
                %v710 = vld [vmem:[%s698 + $0x28] sm:%s691]
                %711 = vst [vmem:[%s699 + $0x48] sm:%s691] %v710
                %v712 = vld [vmem:[%s698 + $0x30] sm:%s691]
                %713 = vst [vmem:[%s699 + $0x50] sm:%s691] %v712
                %v714 = vld [vmem:[%s698 + $0x38] sm:%s691]
                %715 = vst [vmem:[%s699 + $0x58] sm:%s691] %v714
              $region53: #{tpu_custom_call.1} parent=47 // loop_footer
                %s697 = sadd.s32 1, %s693
              $region54: #{tpu_custom_call.1} parent=47 // loop_footer_branch
                %692 = sbr.rel target = $region50
              $region55: #{tpu_custom_call.1} parent=47 // loop_exit
                _
            $region48: #{tpu_custom_call.1} parent=39 // pred_fallthru
              _
          $region40: #{tpu_custom_call.1} parent=35 // pred_fallthru
            _
          %744 = vnop
        $region36: #{tpu_custom_call.1} parent=31 // pred_fallthru
          _
      $region32: #{tpu_custom_call.1} parent=5 // pred_fallthru
        _
      %p745 = scmp.le.s32.totalorder 2, %s9
      // Predicated region
      $region71: #{tpu_custom_call.1} parent=5 // pred_check
        %p746 = pneg %p745
      $region72: #{tpu_custom_call.1} parent=5 // pred_check_branch
        %748 = sbr.rel (%p746) target = $region74
      $region73: #{tpu_custom_call.1} parent=5 // pred_region
        %s749 = ssub.s32 %s9, 2
        // Predicated region
        $region75: #{tpu_custom_call.1} parent=73 // pred_check
          %p750 = pneg %p111
        $region76: #{tpu_custom_call.1} parent=73 // pred_check_branch
          %752 = sbr.rel (%p750) target = $region78
        $region77: #{tpu_custom_call.1} parent=73 // pred_region
          %s753 = sand.u32 %s96, 1
          %s754 = sand.u32 %s96, 1
          %s755 = smul.addr %s754, 64
          %s756 = scalar_lea.vmem [#allocation2], %s755
        $region78: #{tpu_custom_call.1} parent=73 // pred_fallthru
          _
      $region74: #{tpu_custom_call.1} parent=5 // pred_fallthru
        _
    $region6: #{tpu_custom_call.1} parent=1 // loop_footer
      %s13 = sadd.s32 1, %s9
    $region7: #{tpu_custom_call.1} parent=1 // loop_footer_branch
      %8 = sbr.rel target = $region3
    $region8: #{tpu_custom_call.1} parent=1 // loop_exit
      _

</llo_original>
